<compile_context>
chip_gen: v6e
topology: v6e:2x2x1
jax: 0.10.0
libtpu: 0.0.40
codegen_flags: <defaults>
</compile_context>

<pallas_src>
import functools

import jax
import jax.numpy as jnp
from jax.experimental import pallas as pl
from jax.experimental.pallas import tpu as pltpu

_TARGET_BLOCK_BYTES = 4 << 20  # ~4 MiB per block per array


def _cdiv(a: int, b: int) -> int:
    return -(-a // b)


def _round_up(a: int, b: int) -> int:
    return _cdiv(a, b) * b


def _pick_row_tile(rows: int, lanes: int, itemsize: int) -> int:
    """Rows per block: ~_TARGET_BLOCK_BYTES, sublane-aligned, balanced, and
    >= 2 blocks whenever possible (keeps both v7x TensorCores busy)."""
    sub = 8 * max(1, 4 // itemsize)          # 8 (f32) / 16 (bf16) / 32 (i8/fp8)
    target = max(sub, (_TARGET_BLOCK_BYTES // (lanes * itemsize)) // sub * sub)
    if rows < 2 * sub:
        return rows                           # single full-extent block (tiny input)
    nblk = max(2, _cdiv(rows, target))        # >= 2 blocks for megacore sharding
    return min(target, _round_up(_cdiv(rows, nblk), sub))


def _binary_tanh_kernel_bin(x_ref, o_ref):
    x = x_ref[...]
    y = jnp.maximum(x, jnp.zeros_like(x))     # ReLU
    one = jnp.array(1, dtype=y.dtype)
    # sign(relu(x)): 0 -> 0, >0 -> +1, NaN propagates.
    o_ref[...] = jnp.where(y > 0, one, y)


def _binary_tanh_kernel_nobin(x_ref, o_ref):
    x = x_ref[...]
    o_ref[...] = jnp.maximum(x, jnp.zeros_like(x))   # ReLU only


def _relu_sign_ref(v, bin_acts):
    y = jnp.maximum(v, jnp.zeros_like(v))
    return jnp.sign(y) if bin_acts else y


@functools.partial(jax.jit, static_argnames=("bin_acts",))
def binary_tanh(x: jax.Array, bin_acts: bool = True) -> jax.Array:
    """Elementwise BinaryTanh forward. Works for any shape / float dtype."""
    orig_shape = x.shape
    dtype = x.dtype
    flat = x.reshape(-1)
    n = flat.shape[0]
    if n == 0:
        return x

    # Widest lane count in {1024, 512, 256, 128} that divides n; fall back to
    # 128 (tail path only triggers when n % 128 != 0).
    lanes = 128
    for cand in (1024, 512, 256):
        if n % cand == 0:
            lanes = cand
            break

    n_bulk = (n // lanes) * lanes
    if n_bulk == 0:
        # Sub-128-element input: not worth a kernel launch.
        return _relu_sign_ref(x, bin_acts)

    rows = n_bulk // lanes
    itemsize = jnp.dtype(dtype).itemsize
    row_tile = _pick_row_tile(rows, lanes, itemsize)
    grid = (pl.cdiv(rows, row_tile),)   # partial last block is masked by Pallas

    # No tail (the common case): full-array reshape, no copies.
    slab = (flat if n_bulk == n else flat[:n_bulk]).reshape(rows, lanes)
    kernel = _binary_tanh_kernel_bin if bin_acts else _binary_tanh_kernel_nobin

    out_slab = pl.pallas_call(
        kernel,
        out_shape=jax.ShapeDtypeStruct((rows, lanes), dtype),
        grid=grid,
        in_specs=[pl.BlockSpec((row_tile, lanes), lambda i: (i, 0))],
        out_specs=pl.BlockSpec((row_tile, lanes), lambda i: (i, 0)),
        compiler_params=pltpu.CompilerParams(
            dimension_semantics=("parallel",),   # shards across TCs on v7x
            vmem_limit_bytes=40 << 20,           # 4 MiB blocks x2 arrays x2 bufs + headroom
        ),
    )(slab)

    out_flat = out_slab.reshape(-1)
    if n_bulk < n:
        # <128-element tail handled in plain JAX (rare: n % 128 != 0).
        tail_out = _relu_sign_ref(flat[n_bulk:], bin_acts)
        out_flat = jnp.concatenate([out_flat, tail_out])
    return out_flat.reshape(orig_shape)


if __name__ == "__main__":
    key = jax.random.PRNGKey(0)
    k1, k2, k3 = jax.random.split(key, 3)

    # Primary test: NCHW activation tensor as the PyTorch module implies.
    x = jax.random.normal(k1, (2, 4, 16, 16), dtype=jnp.float32)
    y = jax.block_until_ready(binary_tanh(x, bin_acts=True))
    ref = jnp.sign(jnp.maximum(x, 0.0))
    assert y.shape == x.shape and y.dtype == x.dtype
    assert bool(jnp.all(y == ref))

    # No-binarization path (args.bin_acts == False).
    y2 = jax.block_until_ready(binary_tanh(x, bin_acts=False))
    assert bool(jnp.all(y2 == jnp.maximum(x, 0.0)))

    # n multiple of 128 but not of 1024 -> adaptive 128-lane slab, no tail,
    # two balanced blocks (megacore path), masked partial last block.
    xa = jax.random.normal(k2, (37, 384), dtype=jnp.float32)
    ya = jax.block_until_ready(binary_tanh(xa, bin_acts=True))
    assert bool(jnp.all(ya == jnp.sign(jnp.maximum(xa, 0.0))))

    # n not a multiple of 128 -> kernel bulk + small plain-JAX tail.
    xb = jax.random.normal(k3, (160 * 1024 + 77,), dtype=jnp.float32)
    yb = jax.block_until_ready(binary_tanh(xb, bin_acts=True))
    assert yb.shape == xb.shape
    assert bool(jnp.all(yb == jnp.sign(jnp.maximum(xb, 0.0))))

    # bf16 path (dtype-aware sublane rounding).
    xc = jax.random.normal(k1, (8, 16, 64), dtype=jnp.bfloat16)
    yc = jax.block_until_ready(binary_tanh(xc, bin_acts=True))
    assert yc.dtype == jnp.bfloat16
    assert bool(jnp.all(yc == jnp.sign(jnp.maximum(xc, jnp.bfloat16(0)))))

    print("KERNEL_OK")
</pallas_src>

<mosaic_0001>
module attributes {stable_mosaic.version = 11 : i64} {
  func.func @_binary_tanh_kernel_bin(%arg0: i32, %arg1: memref<2x1024xf32, #tpu.memory_space<vmem>>, %arg2: memref<2x1024xf32, #tpu.memory_space<vmem>>) attributes {dimension_semantics = [#tpu.dimension_semantics<parallel>], iteration_bounds = array<i64: 1>, scalar_prefetch = 0 : i64, scratch_operands = 0 : i64, tpu.core_type = #tpu.core_type<tc>, window_params = [{transform_indices = @transform_0, window_bounds = array<i64: 2, 1024>}, {transform_indices = @transform_1, window_bounds = array<i64: 2, 1024>}]} {
    %c0 = arith.constant 0 : index
    %c0_0 = arith.constant 0 : index
    %0 = vector.load %arg1[%c0, %c0_0] : memref<2x1024xf32, #tpu.memory_space<vmem>>, vector<2x1024xf32>
    %cst = arith.constant 0.000000e+00 : f32
    %1 = vector.broadcast %cst : f32 to vector<2x1024xf32>
    %2 = arith.maximumf %0, %1 : vector<2x1024xf32>
    %cst_1 = arith.constant 0.000000e+00 : f32
    %3 = vector.broadcast %cst_1 : f32 to vector<2x1024xf32>
    %4 = arith.cmpf ogt, %2, %3 : vector<2x1024xf32>
    %cst_2 = arith.constant 1.000000e+00 : f32
    %5 = vector.broadcast %cst_2 : f32 to vector<2x1024xf32>
    %6 = arith.select %4, %5, %2 : vector<2x1024xi1>, vector<2x1024xf32>
    %c0_3 = arith.constant 0 : index
    %c0_4 = arith.constant 0 : index
    %7 = vector.load %arg2[%c0_3, %c0_4] : memref<2x1024xf32, #tpu.memory_space<vmem>>, vector<2x1024xf32>
    tpu.vector_store %arg2[%c0_3, %c0_4], %6 {strides = array<i32>} : memref<2x1024xf32, #tpu.memory_space<vmem>>, vector<2x1024xf32>,
    return
  }
  func.func @transform_0(%arg0: i32) -> (i32, i32) {
    %c0_i32 = arith.constant 0 : i32
    %c0_i32_0 = arith.constant 0 : i32
    return %arg0, %c0_i32 : i32, i32
  }
  func.func @transform_1(%arg0: i32) -> (i32, i32) {
    %c0_i32 = arith.constant 0 : i32
    %c0_i32_0 = arith.constant 0 : i32
    return %arg0, %c0_i32 : i32, i32
  }
}

</mosaic_0001>

<llo_original>
// kernel: binary_tanh.1
$region0: #{binary_tanh.1}
  #allocation0 [shape = 'u32[]', space=smem, size = 0x4, offset = 0x4, fixed_abs, tag = 'smem constant byte address 0x4 - core index']
  #allocation1 [shape = 'u32[144,128]{1,0:T(1,128)}', space=vmem, size = 0x12000, scoped, tag = 'internal scratch']
  %s0 = inlined_call_operand.vmem [shape: f32[2,1024], index: 0, kind: input, shape index: {}]
  %s1 = inlined_call_operand.vmem [shape: f32[2,1024], index: 1, kind: output, shape index: {}]
  %s2 = sld [smem:[#allocation0]]
  $region14: #{binary_tanh.1} parent=0
    _
  %s4 = ssub.s32 1, %s2
  %s5 = scalar_select 0, %s4, %s2
  // Predicated region
  $region2: #{binary_tanh.1} parent=0 // pred_check
    _
  $region3: #{binary_tanh.1} parent=0 // pred_check_branch
    %7 = sbr.rel (0) target = $region5
  $region4: #{binary_tanh.1} parent=0 // pred_region
    _
  $region5: #{binary_tanh.1} parent=0 // pred_fallthru
    _
  %v8 = vld [vmem:[%s0] sm:$0xff]
  %v9 = vld [vmem:[%s0 + $0x8] sm:$0xff]
  %v10 = vmax.f32 %v8, 0.0
  %v11 = vmax.f32 %v9, 0.0
  %vm12 = vcmp.gt.f32.partialorder %v10, 0.0
  %vm13 = vcmp.gt.f32.partialorder %v11, 0.0
  %v14 = vsel %vm12, 1.0, %v10
  %v15 = vsel %vm13, 1.0, %v11
  %16 = vst [vmem:[%s1] sm:$0xff] %v14
  %17 = vst [vmem:[%s1 + $0x8] sm:$0xff] %v15
  // Predicated region
  $region6: #{binary_tanh.1} parent=0 // pred_check
    _
  $region7: #{binary_tanh.1} parent=0 // pred_check_branch
    %19 = sbr.rel (0) target = $region9
  $region8: #{binary_tanh.1} parent=0 // pred_region
    _
  $region9: #{binary_tanh.1} parent=0 // pred_fallthru
    _
  // Predicated region
  $region10: #{binary_tanh.1} parent=0 // pred_check
    _
  $region11: #{binary_tanh.1} parent=0 // pred_check_branch
    %21 = sbr.rel (0) target = $region13
  $region12: #{binary_tanh.1} parent=0 // pred_region
    _
  $region13: #{binary_tanh.1} parent=0 // pred_fallthru
    _

</llo_original>
